<compile_context>
chip_gen: v5e
topology: v5e:2x2
jax: 0.10.0
libtpu: 0.0.40
codegen_flags: <defaults>
</compile_context>

<pallas_src>
import functools

import jax
import jax.numpy as jnp
from jax.experimental import pallas as pl
from jax.experimental.pallas import tpu as pltpu

_THRESHOLD = 1                           # aten.threshold_backward(..., threshold=1)
_TARGET_BLOCK_BYTES = 4 * 1024 * 1024    # per array per grid step
_MIN_BLOCK_BYTES = 512 * 1024            # never shrink blocks below this
_MIN_GRID_STEPS = 4                      # keep both v7x TensorCores busy
_VMEM_LIMIT_BYTES = 32 * 1024 * 1024     # 3 arrays x 2 buffers x 4 MiB = 24 MiB


def _threshold_backward_kernel(g_ref, x_ref, o_ref):
    g = g_ref[...]
    x = x_ref[...]
    # grad flows through where input > threshold, else 0.
    o_ref[...] = jnp.where(x > _THRESHOLD, g, jnp.zeros_like(g))


def _choose_block(shape, itemsize, target_bytes):
    """Pick a (b0, b1, d2) block for a 3-D array.

    The last dim is always kept whole (legal for any size); the middle dim is
    split in multiples of 8 only when one leading-dim slice already exceeds
    the byte target.  Ragged boundaries are handled by Pallas masking.
    """
    d0, d1, d2 = shape
    tgt_elems = max(1, target_bytes // itemsize)
    min_elems = max(1, _MIN_BLOCK_BYTES // itemsize)
    slice_elems = d1 * d2

    if slice_elems > tgt_elems and d1 > 8:
        # One d0-slice is already bigger than the target: split the middle dim.
        b0 = 1
        b1 = max(8, (tgt_elems // max(d2, 1)) // 8 * 8)
        if b1 >= d1:
            b1 = d1
    else:
        b1 = d1
        b0 = max(1, min(d0, tgt_elems // max(slice_elems, 1)))
        # Prefer >= _MIN_GRID_STEPS grid steps (megacore balance on v7x), but
        # never at the cost of blocks smaller than _MIN_BLOCK_BYTES.
        if d0 // b0 < _MIN_GRID_STEPS:
            b0_more_steps = max(1, d0 // _MIN_GRID_STEPS)
            if b0_more_steps * slice_elems >= min_elems:
                b0 = b0_more_steps
    return b0, b1


def threshold_backward(grad: jax.Array, inp: jax.Array, *,
                       min_pallas_elems: int = 1 << 20,
                       target_block_bytes: int = _TARGET_BLOCK_BYTES,
                       donate_grad: bool = False) -> jax.Array:
    """aten.threshold_backward(grad, input, 1) for same-shape arrays."""
    assert grad.shape == inp.shape, "grad and input must have the same shape"
    assert grad.dtype == inp.dtype, "grad and input must have the same dtype"
    n = grad.size
    itemsize = jnp.dtype(grad.dtype).itemsize

    def _xla_fallback():
        return jnp.where(inp > _THRESHOLD, grad, jnp.zeros_like(grad))

    # Small tensors (or shapes this wrapper does not tile): a fused XLA
    # elementwise where() is already at the HBM roofline.
    if grad.ndim != 3 or n == 0 or n < min_pallas_elems:
        return _xla_fallback()

    d0, d1, d2 = grad.shape
    b0, b1 = _choose_block(grad.shape, itemsize, target_block_bytes)
    block_bytes = b0 * b1 * d2 * itemsize
    # 2 inputs + 1 output, each double-buffered by the BlockSpec pipeline.
    if 6 * block_bytes > _VMEM_LIMIT_BYTES:
        # Degenerate shapes (e.g. an enormous trailing dim) that this simple
        # tiling cannot keep inside VMEM: let XLA handle them.
        return _xla_fallback()

    grid = (pl.cdiv(d0, b0), pl.cdiv(d1, b1))
    block_spec = pl.BlockSpec((b0, b1, d2), lambda i, j: (i, j, 0))

    return pl.pallas_call(
        _threshold_backward_kernel,
        out_shape=jax.ShapeDtypeStruct(grad.shape, grad.dtype),
        grid_spec=pltpu.PrefetchScalarGridSpec(
            num_scalar_prefetch=0,
            grid=grid,
            in_specs=[block_spec, block_spec],
            out_specs=block_spec,
        ),
        compiler_params=pltpu.CompilerParams(
            dimension_semantics=("parallel", "parallel"),
            vmem_limit_bytes=_VMEM_LIMIT_BYTES,
        ),
        cost_estimate=pl.CostEstimate(
            flops=n, transcendentals=0, bytes_accessed=3 * n * itemsize),
        # grad has the same shape/dtype as the output; reuse its HBM buffer
        # when the caller donates it (saves a full-size allocation).
        input_output_aliases={0: 0} if donate_grad else {},
    )(grad, inp)


def _reference(grad, inp):
    return jnp.where(inp > _THRESHOLD, grad, jnp.zeros_like(grad))


if __name__ == "__main__":
    key = jax.random.PRNGKey(0)
    keys = jax.random.split(key, 8)

    # Case 1: tiny 3-D int tensors matching the module's [-1,-1,-1] int64
    # annotation (int64 -> int32 here).  Force the Pallas path (single block,
    # block dims == full array dims).
    shape1 = (2, 4, 16)
    g1 = jax.random.randint(keys[0], shape1, -10, 10, dtype=jnp.int32)
    x1 = jax.random.randint(keys[1], shape1, -10, 10, dtype=jnp.int32)
    o1 = threshold_backward(g1, x1, min_pallas_elems=0)
    jax.block_until_ready(o1)
    assert o1.shape == shape1 and o1.dtype == g1.dtype
    assert jnp.array_equal(o1, _reference(g1, x1)), "case1 mismatch"

    # Case 2: ragged middle-dim tiling (b1 = 8, grid = (3, 3), masked
    # boundary blocks), forced via a tiny block-byte target.
    shape2 = (3, 21, 160)
    g2 = jax.random.randint(keys[2], shape2, -100, 100, dtype=jnp.int32)
    x2 = jax.random.randint(keys[3], shape2, -100, 100, dtype=jnp.int32)
    o2 = threshold_backward(g2, x2, min_pallas_elems=0,
                            target_block_bytes=8 * 160 * 4)
    jax.block_until_ready(o2)
    assert jnp.array_equal(o2, _reference(g2, x2)), "case2 mismatch"

    # Case 3: ragged leading-dim tiling (b0 = 2 over d0 = 7 -> grid (4, 1)).
    shape3 = (7, 4, 64)
    g3 = jax.random.randint(keys[4], shape3, -100, 100, dtype=jnp.int32)
    x3 = jax.random.randint(keys[5], shape3, -100, 100, dtype=jnp.int32)
    o3 = threshold_backward(g3, x3, min_pallas_elems=0,
                            target_block_bytes=2 * 4 * 64 * 4)
    jax.block_until_ready(o3)
    assert jnp.array_equal(o3, _reference(g3, x3)), "case3 mismatch"

    # Case 4: donated grad -> output aliases grad's HBM allocation
    # (input_output_aliases={0: 0} + jit donation).
    shape4 = (2, 4, 16)
    g4 = jax.random.randint(keys[6], shape4, -10, 10, dtype=jnp.int32)
    x4 = jax.random.randint(keys[7], shape4, -10, 10, dtype=jnp.int32)
    ref4 = _reference(g4, x4)          # computed before g4 is donated
    run_aliased = jax.jit(
        functools.partial(threshold_backward, min_pallas_elems=0,
                          donate_grad=True),
        donate_argnums=(0,))
    o4 = run_aliased(g4, x4)
    jax.block_until_ready(o4)
    assert jnp.array_equal(o4, ref4), "case4 mismatch"

    # Case 5: small tensor through the default path (fused XLA where(),
    # no kernel launch below min_pallas_elems).
    o5 = threshold_backward(g1, x1)
    jax.block_until_ready(o5)
    assert jnp.array_equal(o5, _reference(g1, x1)), "case5 mismatch"

    print("KERNEL_OK")
</pallas_src>

<mosaic_0001>
module attributes {stable_mosaic.version = 11 : i64} {
  func.func @_threshold_backward_kernel(%arg0: i32, %arg1: i32, %arg2: memref<2x4x16xi32, #tpu.memory_space<vmem>>, %arg3: memref<2x4x16xi32, #tpu.memory_space<vmem>>, %arg4: memref<2x4x16xi32, #tpu.memory_space<vmem>>) attributes {dimension_semantics = [#tpu.dimension_semantics<parallel>, #tpu.dimension_semantics<parallel>], iteration_bounds = array<i64: 1, 1>, scalar_prefetch = 0 : i64, scratch_operands = 0 : i64, tpu.core_type = #tpu.core_type<tc>, window_params = [{transform_indices = @transform_0, window_bounds = array<i64: 2, 4, 16>}, {transform_indices = @transform_1, window_bounds = array<i64: 2, 4, 16>}, {transform_indices = @transform_2, window_bounds = array<i64: 2, 4, 16>}]} {
    %c0 = arith.constant 0 : index
    %c0_0 = arith.constant 0 : index
    %c0_1 = arith.constant 0 : index
    %0 = vector.load %arg2[%c0, %c0_0, %c0_1] : memref<2x4x16xi32, #tpu.memory_space<vmem>>, vector<2x4x16xi32>
    %c0_2 = arith.constant 0 : index
    %c0_3 = arith.constant 0 : index
    %c0_4 = arith.constant 0 : index
    %1 = vector.load %arg3[%c0_2, %c0_3, %c0_4] : memref<2x4x16xi32, #tpu.memory_space<vmem>>, vector<2x4x16xi32>
    %c1_i32 = arith.constant 1 : i32
    %2 = vector.broadcast %c1_i32 : i32 to vector<2x4x16xi32>
    %3 = arith.cmpi sgt, %1, %2 : vector<2x4x16xi32>
    %c0_i32 = arith.constant 0 : i32
    %4 = vector.broadcast %c0_i32 : i32 to vector<2x4x16xi32>
    %5 = arith.select %3, %0, %4 : vector<2x4x16xi1>, vector<2x4x16xi32>
    %c0_5 = arith.constant 0 : index
    %c0_6 = arith.constant 0 : index
    %c0_7 = arith.constant 0 : index
    %6 = vector.load %arg4[%c0_5, %c0_6, %c0_7] : memref<2x4x16xi32, #tpu.memory_space<vmem>>, vector<2x4x16xi32>
    tpu.vector_store %arg4[%c0_5, %c0_6, %c0_7], %5 {strides = array<i32>} : memref<2x4x16xi32, #tpu.memory_space<vmem>>, vector<2x4x16xi32>,
    return
  }
  func.func @transform_0(%arg0: i32, %arg1: i32) -> (i32, i32, i32) {
    %c0_i32 = arith.constant 0 : i32
    %c0_i32_0 = arith.constant 0 : i32
    return %arg0, %arg1, %c0_i32 : i32, i32, i32
  }
  func.func @transform_1(%arg0: i32, %arg1: i32) -> (i32, i32, i32) {
    %c0_i32 = arith.constant 0 : i32
    %c0_i32_0 = arith.constant 0 : i32
    return %arg0, %arg1, %c0_i32 : i32, i32, i32
  }
  func.func @transform_2(%arg0: i32, %arg1: i32) -> (i32, i32, i32) {
    %c0_i32 = arith.constant 0 : i32
    %c0_i32_0 = arith.constant 0 : i32
    return %arg0, %arg1, %c0_i32 : i32, i32, i32
  }
}

</mosaic_0001>

<llo_original>
// kernel: tpu_custom_call.1
$region0: #{tpu_custom_call.1}
  #allocation0 [shape = 'u32[]', space=smem, size = 0x4, offset = 0x4, fixed_abs, tag = 'smem constant byte address 0x4 - core index']
  #allocation1 [shape = 'u32[72,128]{1,0:T(1,128)}', space=vmem, size = 0x9000, scoped, tag = 'internal scratch']
  %s0 = inlined_call_operand.hbm [shape: s32[2,4,16], index: 0, kind: input, shape index: {}]
  %s1 = inlined_call_operand.hbm [shape: s32[2,4,16], index: 1, kind: input, shape index: {}]
  %s2 = inlined_call_operand.hbm [shape: s32[2,4,16], index: 2, kind: output, shape index: {}]
  %s3 = sld [smem:[#allocation0]]
  $region26: #{tpu_custom_call.1} parent=0
    _
  %s5 = ssub.s32 1, %s3
  %s6 = scalar_select 0, %s5, %s3
  $region1: #{tpu_custom_call.1} parent=0
    #allocation2 [shape = 'u8[4096]{0}', space=vmem, size = 0x1000, scoped, tag = 'input window, operand 0, single buffered']
    #allocation3 [shape = 's32[1]{0}', space=sflag, size = 0x4, scoped, tag = 'scoped memory for tpu_custom_call.1']
    #allocation4 [shape = 's32[1]{0}', space=sflag, size = 0x4, scoped, tag = 'scoped memory for tpu_custom_call.1']
    #allocation5 [shape = 'u8[4096]{0}', space=vmem, size = 0x1000, scoped, tag = 'input window, operand 1, single buffered']
    #allocation6 [shape = 's32[1]{0}', space=sflag, size = 0x4, scoped, tag = 'scoped memory for tpu_custom_call.1']
    #allocation7 [shape = 'u8[4096]{0}', space=vmem, size = 0x1000, scoped, tag = 'output window, operand 0, single buffered']
    %7 = vsyncpa [#allocation3], 0
    %8 = vsyncpa [#allocation6], 0
    %9 = vsyncpa [#allocation4], 0
    // Predicated region
    $region2: #{tpu_custom_call.1} parent=1 // pred_check
      _
    $region3: #{tpu_custom_call.1} parent=1 // pred_check_branch
      %11 = sbr.rel (0) target = $region5
    $region4: #{tpu_custom_call.1} parent=1 // pred_region
      %13 = vsyncadd [#allocation3], 0
      %s14 = sshll.u32 %s0, 4
      %s15 = int_to_ptr.hbm [resolvable:$true] %s14
      %s16 = sshll.u32 [#allocation2], 4
      %s17 = int_to_ptr.vmem [resolvable:$true] %s16
      %22 = dma.hbm_to_vmem [thread:$0]  %s15, 128, %s17, [#allocation3], 64, 64, 4
    $region5: #{tpu_custom_call.1} parent=1 // pred_fallthru
      _
    // Predicated region
    $region6: #{tpu_custom_call.1} parent=1 // pred_check
      _
    $region7: #{tpu_custom_call.1} parent=1 // pred_check_branch
      %24 = sbr.rel (0) target = $region9
    $region8: #{tpu_custom_call.1} parent=1 // pred_region
      %26 = vsyncadd [#allocation6], 0
      %s27 = sshll.u32 %s1, 4
      %s28 = int_to_ptr.hbm [resolvable:$true] %s27
      %s29 = sshll.u32 [#allocation5], 4
      %s30 = int_to_ptr.vmem [resolvable:$true] %s29
      %35 = dma.hbm_to_vmem [thread:$0]  %s28, 128, %s30, [#allocation6], 64, 64, 4
    $region9: #{tpu_custom_call.1} parent=1 // pred_fallthru
      _
    // Predicated region
    $region10: #{tpu_custom_call.1} parent=1 // pred_check
      _
    $region11: #{tpu_custom_call.1} parent=1 // pred_check_branch
      %37 = sbr.rel (0) target = $region13
    $region12: #{tpu_custom_call.1} parent=1 // pred_region
      %39 = dma.done [#allocation3], 128
    $region13: #{tpu_custom_call.1} parent=1 // pred_fallthru
      _
    // Predicated region
    $region14: #{tpu_custom_call.1} parent=1 // pred_check
      _
    $region15: #{tpu_custom_call.1} parent=1 // pred_check_branch
      %41 = sbr.rel (0) target = $region17
    $region16: #{tpu_custom_call.1} parent=1 // pred_region
      %43 = dma.done [#allocation6], 128
    $region17: #{tpu_custom_call.1} parent=1 // pred_fallthru
      _
    %v44 = vld [vmem:[#allocation2] sm:$0xf]
    %v45 = vld [vmem:[#allocation2 + $0x4] sm:$0xf]
    %v46 = vld [vmem:[#allocation5] sm:$0xf]
    %v47 = vld [vmem:[#allocation5 + $0x4] sm:$0xf]
    %vm48 = vcmp.gt.s32.totalorder %v46, 1
    %vm49 = vcmp.gt.s32.totalorder %v47, 1
    %v50 = vsel %vm48, %v44, 0
    %v51 = vsel %vm49, %v45, 0
    %vm52 = vcmask 125952
    %53 = vst.msk [vmem:[#allocation7] sm:$0xf] %vm52, %v50
    %54 = vst.msk [vmem:[#allocation7 + $0x4] sm:$0xf] %vm52, %v51
    // Predicated region
    $region18: #{tpu_custom_call.1} parent=1 // pred_check
      _
    $region19: #{tpu_custom_call.1} parent=1 // pred_check_branch
      %56 = sbr.rel (0) target = $region21
    $region20: #{tpu_custom_call.1} parent=1 // pred_region
      %58 = vsyncadd [#allocation4], 0
      %s59 = sshll.u32 [#allocation7], 4
      %s60 = int_to_ptr.vmem [resolvable:$true] %s59
      %s61 = sshll.u32 %s2, 4
      %s62 = int_to_ptr.hbm [resolvable:$true] %s61
      %67 = dma.vmem_to_hbm [thread:$0]  %s60, 128, %s62, [#allocation4], 64, 64, 4
    $region21: #{tpu_custom_call.1} parent=1 // pred_fallthru
      _
    // Predicated region
    $region22: #{tpu_custom_call.1} parent=1 // pred_check
      _
    $region23: #{tpu_custom_call.1} parent=1 // pred_check_branch
      %69 = sbr.rel (0) target = $region25
    $region24: #{tpu_custom_call.1} parent=1 // pred_region
      %71 = dma.done [#allocation4], 128
    $region25: #{tpu_custom_call.1} parent=1 // pred_fallthru
      _
    %72 = vsyncpa [#allocation3], 1
    %73 = vsyncpa [#allocation6], 1
    %74 = vsyncpa [#allocation4], 1

</llo_original>
